<compile_context>
chip_gen: v7x
topology: tpu7x:2x2x1
jax: 0.10.0
libtpu: 0.0.40
codegen_flags: <defaults>
</compile_context>

<pallas_src>
import functools

import jax
import jax.numpy as jnp
from jax.experimental import pallas as pl
from jax.experimental.pallas import tpu as pltpu


def _lenet2_classifier_kernel(x_ref, w_ref, b_ref, o_ref):
    """relu -> (dropout: identity in eval) -> linear, all on the VPU.

    x_ref: (IN_F, TB)  f32 in VMEM, batch on lanes.
    w_ref: (OUT_F, IN_F) f32 in SMEM (PyTorch (out, in) layout, untransposed).
    b_ref: (OUT_F,)      f32 in SMEM.
    o_ref: (OUT_F, TB)   f32 in VMEM, batch on lanes.
    """
    in_f = x_ref.shape[0]
    out_f = o_ref.shape[0]
    tb = x_ref.shape[1]

    # Accumulators start at the bias (scalar broadcast from SMEM).
    acc = [jnp.full((1, tb), b_ref[j], dtype=jnp.float32) for j in range(out_f)]

    # 6 lane-dense row loads, 6 ReLUs, 12 scalar-broadcast MACs -- all VPU.
    for k in range(in_f):
        xk = jnp.maximum(x_ref[pl.ds(k, 1), :], 0.0)     # (1, TB), ReLU'd row
        # Dropout (eval mode) == identity.
        for j in range(out_f):
            acc[j] = acc[j] + w_ref[j, k] * xk

    # Lane-dense stores (one sublane row each).
    for j in range(out_f):
        o_ref[pl.ds(j, 1), :] = acc[j]


def lenet2_classifier_forward(feat, weight, bias, *, tb=2048):
    """Run the LeNet2 classifier head.

    Args:
      feat:   (B, 6)  float32 activations.
      weight: (2, 6)  float32, PyTorch nn.Linear weight layout (out, in).
      bias:   (2,)    float32.
      tb:     batch tile width (lanes) used when B > tb.

    Returns:
      (B, 2) float32 logits.
    """
    B, in_f = feat.shape
    out_f = weight.shape[0]

    # Layout plumbing: put batch on the lane axis -> (in_f, B).
    feat_t = feat.T

    if B <= tb:
        TB = B                      # full-extent block (legal for any B)
        B_pad = B
    else:
        TB = tb                     # multiple of 128 -> unmasked vst
        B_pad = pl.cdiv(B, TB) * TB
        if B_pad != B:
            feat_t = jnp.pad(feat_t, ((0, 0), (0, B_pad - B)))
    grid = (B_pad // TB,)

    out_t = pl.pallas_call(
        _lenet2_classifier_kernel,
        out_shape=jax.ShapeDtypeStruct((out_f, B_pad), jnp.float32),
        grid=grid,
        in_specs=[
            # feat tile: batch grid over lanes; sublane dim = full extent (6).
            pl.BlockSpec((in_f, TB), lambda i: (0, i)),
            # weight/bias: whole-array scalar tables in SMEM, grid-resident.
            pl.BlockSpec(memory_space=pltpu.MemorySpace.SMEM),
            pl.BlockSpec(memory_space=pltpu.MemorySpace.SMEM),
        ],
        out_specs=pl.BlockSpec((out_f, TB), lambda i: (0, i)),
        compiler_params=pltpu.CompilerParams(
            dimension_semantics=("parallel",),   # 2x on v7x's two TCs
        ),
    )(feat_t, weight, bias)

    return out_t[:, :B].T           # back to (B, out_f)


def _reference_forward(feat, weight, bias):
    """Pure-JAX reference (eval-mode dropout = identity)."""
    x = jnp.maximum(feat, 0.0)
    return x @ weight.T + bias


if __name__ == "__main__":
    key = jax.random.PRNGKey(0)
    k_feat, k_w, k_b, k_feat2 = jax.random.split(key, 4)

    IN_F, OUT_F = 6, 2

    # Deterministic parameter init mimicking nn.Linear's default
    # U(-1/sqrt(in_features), 1/sqrt(in_features)).
    bound = 1.0 / jnp.sqrt(jnp.float32(IN_F))
    weight = jax.random.uniform(k_w, (OUT_F, IN_F), jnp.float32, -bound, bound)
    bias = jax.random.uniform(k_b, (OUT_F,), jnp.float32, -bound, bound)

    fwd = jax.jit(functools.partial(lenet2_classifier_forward, tb=2048))

    # Small-batch case (single tile, grid=(1,)).
    B1 = 8
    feat1 = jax.random.normal(k_feat, (B1, IN_F), jnp.float32)
    out1 = jax.block_until_ready(fwd(feat1, weight, bias))
    ref1 = _reference_forward(feat1, weight, bias)
    assert out1.shape == (B1, OUT_F), out1.shape
    assert jnp.allclose(out1, ref1, atol=1e-5, rtol=1e-5), (out1, ref1)

    # Larger, non-multiple batch to exercise the padded batch grid.
    B2 = 4100
    feat2 = jax.random.normal(k_feat2, (B2, IN_F), jnp.float32)
    out2 = jax.block_until_ready(fwd(feat2, weight, bias))
    ref2 = _reference_forward(feat2, weight, bias)
    assert out2.shape == (B2, OUT_F), out2.shape
    assert jnp.allclose(out2, ref2, atol=1e-5, rtol=1e-5)

    print("KERNEL_OK")
</pallas_src>

<mosaic_0001>
module attributes {stable_mosaic.version = 11 : i64} {
  func.func @_lenet2_classifier_kernel(%arg0: i32, %arg1: memref<6x8xf32, #tpu.memory_space<vmem>>, %arg2: memref<2x6xf32, #tpu.memory_space<smem>>, %arg3: memref<2xf32, #tpu.memory_space<smem>>, %arg4: memref<2x8xf32, #tpu.memory_space<vmem>>) attributes {dimension_semantics = [#tpu.dimension_semantics<parallel>], iteration_bounds = array<i64: 1>, scalar_prefetch = 0 : i64, scratch_operands = 0 : i64, tpu.core_type = #tpu.core_type<tc>, window_params = [{transform_indices = @transform_0, window_bounds = array<i64: 6, 8>}, {transform_indices = @transform_1, window_bounds = array<i64: 2, 6>}, {transform_indices = @transform_2, window_bounds = array<i64: 2>}, {transform_indices = @transform_3, window_bounds = array<i64: 2, 8>}]} {
    %c0 = arith.constant 0 : index
    %0 = memref.load %arg3[%c0] : memref<2xf32, #tpu.memory_space<smem>>
    %1 = vector.broadcast %0 : f32 to vector<1x8xf32>
    %c1 = arith.constant 1 : index
    %2 = memref.load %arg3[%c1] : memref<2xf32, #tpu.memory_space<smem>>
    %3 = vector.broadcast %2 : f32 to vector<1x8xf32>
    %c0_0 = arith.constant 0 : index
    %c0_1 = arith.constant 0 : index
    %4 = vector.load %arg1[%c0_0, %c0_1] : memref<6x8xf32, #tpu.memory_space<vmem>>, vector<1x8xf32>
    %cst = arith.constant 0.000000e+00 : f32
    %5 = vector.broadcast %cst : f32 to vector<1x8xf32>
    %6 = arith.maximumf %4, %5 : vector<1x8xf32>
    %c0_2 = arith.constant 0 : index
    %c0_3 = arith.constant 0 : index
    %7 = memref.load %arg2[%c0_2, %c0_3] : memref<2x6xf32, #tpu.memory_space<smem>>
    %8 = vector.broadcast %7 : f32 to vector<1x8xf32>
    %9 = arith.mulf %8, %6 : vector<1x8xf32>
    %10 = arith.addf %1, %9 : vector<1x8xf32>
    %c1_4 = arith.constant 1 : index
    %c0_5 = arith.constant 0 : index
    %11 = memref.load %arg2[%c1_4, %c0_5] : memref<2x6xf32, #tpu.memory_space<smem>>
    %12 = vector.broadcast %11 : f32 to vector<1x8xf32>
    %13 = arith.mulf %12, %6 : vector<1x8xf32>
    %14 = arith.addf %3, %13 : vector<1x8xf32>
    %c1_6 = arith.constant 1 : index
    %c0_7 = arith.constant 0 : index
    %15 = vector.load %arg1[%c1_6, %c0_7] : memref<6x8xf32, #tpu.memory_space<vmem>>, vector<1x8xf32>
    %cst_8 = arith.constant 0.000000e+00 : f32
    %16 = vector.broadcast %cst_8 : f32 to vector<1x8xf32>
    %17 = arith.maximumf %15, %16 : vector<1x8xf32>
    %c0_9 = arith.constant 0 : index
    %c1_10 = arith.constant 1 : index
    %18 = memref.load %arg2[%c0_9, %c1_10] : memref<2x6xf32, #tpu.memory_space<smem>>
    %19 = vector.broadcast %18 : f32 to vector<1x8xf32>
    %20 = arith.mulf %19, %17 : vector<1x8xf32>
    %21 = arith.addf %10, %20 : vector<1x8xf32>
    %c1_11 = arith.constant 1 : index
    %c1_12 = arith.constant 1 : index
    %22 = memref.load %arg2[%c1_11, %c1_12] : memref<2x6xf32, #tpu.memory_space<smem>>
    %23 = vector.broadcast %22 : f32 to vector<1x8xf32>
    %24 = arith.mulf %23, %17 : vector<1x8xf32>
    %25 = arith.addf %14, %24 : vector<1x8xf32>
    %c2 = arith.constant 2 : index
    %c0_13 = arith.constant 0 : index
    %26 = vector.load %arg1[%c2, %c0_13] : memref<6x8xf32, #tpu.memory_space<vmem>>, vector<1x8xf32>
    %cst_14 = arith.constant 0.000000e+00 : f32
    %27 = vector.broadcast %cst_14 : f32 to vector<1x8xf32>
    %28 = arith.maximumf %26, %27 : vector<1x8xf32>
    %c0_15 = arith.constant 0 : index
    %c2_16 = arith.constant 2 : index
    %29 = memref.load %arg2[%c0_15, %c2_16] : memref<2x6xf32, #tpu.memory_space<smem>>
    %30 = vector.broadcast %29 : f32 to vector<1x8xf32>
    %31 = arith.mulf %30, %28 : vector<1x8xf32>
    %32 = arith.addf %21, %31 : vector<1x8xf32>
    %c1_17 = arith.constant 1 : index
    %c2_18 = arith.constant 2 : index
    %33 = memref.load %arg2[%c1_17, %c2_18] : memref<2x6xf32, #tpu.memory_space<smem>>
    %34 = vector.broadcast %33 : f32 to vector<1x8xf32>
    %35 = arith.mulf %34, %28 : vector<1x8xf32>
    %36 = arith.addf %25, %35 : vector<1x8xf32>
    %c3 = arith.constant 3 : index
    %c0_19 = arith.constant 0 : index
    %37 = vector.load %arg1[%c3, %c0_19] : memref<6x8xf32, #tpu.memory_space<vmem>>, vector<1x8xf32>
    %cst_20 = arith.constant 0.000000e+00 : f32
    %38 = vector.broadcast %cst_20 : f32 to vector<1x8xf32>
    %39 = arith.maximumf %37, %38 : vector<1x8xf32>
    %c0_21 = arith.constant 0 : index
    %c3_22 = arith.constant 3 : index
    %40 = memref.load %arg2[%c0_21, %c3_22] : memref<2x6xf32, #tpu.memory_space<smem>>
    %41 = vector.broadcast %40 : f32 to vector<1x8xf32>
    %42 = arith.mulf %41, %39 : vector<1x8xf32>
    %43 = arith.addf %32, %42 : vector<1x8xf32>
    %c1_23 = arith.constant 1 : index
    %c3_24 = arith.constant 3 : index
    %44 = memref.load %arg2[%c1_23, %c3_24] : memref<2x6xf32, #tpu.memory_space<smem>>
    %45 = vector.broadcast %44 : f32 to vector<1x8xf32>
    %46 = arith.mulf %45, %39 : vector<1x8xf32>
    %47 = arith.addf %36, %46 : vector<1x8xf32>
    %c4 = arith.constant 4 : index
    %c0_25 = arith.constant 0 : index
    %48 = vector.load %arg1[%c4, %c0_25] : memref<6x8xf32, #tpu.memory_space<vmem>>, vector<1x8xf32>
    %cst_26 = arith.constant 0.000000e+00 : f32
    %49 = vector.broadcast %cst_26 : f32 to vector<1x8xf32>
    %50 = arith.maximumf %48, %49 : vector<1x8xf32>
    %c0_27 = arith.constant 0 : index
    %c4_28 = arith.constant 4 : index
    %51 = memref.load %arg2[%c0_27, %c4_28] : memref<2x6xf32, #tpu.memory_space<smem>>
    %52 = vector.broadcast %51 : f32 to vector<1x8xf32>
    %53 = arith.mulf %52, %50 : vector<1x8xf32>
    %54 = arith.addf %43, %53 : vector<1x8xf32>
    %c1_29 = arith.constant 1 : index
    %c4_30 = arith.constant 4 : index
    %55 = memref.load %arg2[%c1_29, %c4_30] : memref<2x6xf32, #tpu.memory_space<smem>>
    %56 = vector.broadcast %55 : f32 to vector<1x8xf32>
    %57 = arith.mulf %56, %50 : vector<1x8xf32>
    %58 = arith.addf %47, %57 : vector<1x8xf32>
    %c5 = arith.constant 5 : index
    %c0_31 = arith.constant 0 : index
    %59 = vector.load %arg1[%c5, %c0_31] : memref<6x8xf32, #tpu.memory_space<vmem>>, vector<1x8xf32>
    %cst_32 = arith.constant 0.000000e+00 : f32
    %60 = vector.broadcast %cst_32 : f32 to vector<1x8xf32>
    %61 = arith.maximumf %59, %60 : vector<1x8xf32>
    %c0_33 = arith.constant 0 : index
    %c5_34 = arith.constant 5 : index
    %62 = memref.load %arg2[%c0_33, %c5_34] : memref<2x6xf32, #tpu.memory_space<smem>>
    %63 = vector.broadcast %62 : f32 to vector<1x8xf32>
    %64 = arith.mulf %63, %61 : vector<1x8xf32>
    %65 = arith.addf %54, %64 : vector<1x8xf32>
    %c1_35 = arith.constant 1 : index
    %c5_36 = arith.constant 5 : index
    %66 = memref.load %arg2[%c1_35, %c5_36] : memref<2x6xf32, #tpu.memory_space<smem>>
    %67 = vector.broadcast %66 : f32 to vector<1x8xf32>
    %68 = arith.mulf %67, %61 : vector<1x8xf32>
    %69 = arith.addf %58, %68 : vector<1x8xf32>
    %c0_37 = arith.constant 0 : index
    %c0_38 = arith.constant 0 : index
    %70 = vector.load %arg4[%c0_37, %c0_38] : memref<2x8xf32, #tpu.memory_space<vmem>>, vector<1x8xf32>
    tpu.vector_store %arg4[%c0_37, %c0_38], %65 {strides = array<i32>} : memref<2x8xf32, #tpu.memory_space<vmem>>, vector<1x8xf32>,
    %c1_39 = arith.constant 1 : index
    %c0_40 = arith.constant 0 : index
    %71 = vector.load %arg4[%c1_39, %c0_40] : memref<2x8xf32, #tpu.memory_space<vmem>>, vector<1x8xf32>
    tpu.vector_store %arg4[%c1_39, %c0_40], %69 {strides = array<i32>} : memref<2x8xf32, #tpu.memory_space<vmem>>, vector<1x8xf32>,
    return
  }
  func.func @transform_0(%arg0: i32) -> (i32, i32) {
    %c0_i32 = arith.constant 0 : i32
    %c0_i32_0 = arith.constant 0 : i32
    return %c0_i32, %arg0 : i32, i32
  }
  func.func @transform_1(%arg0: i32) -> (i32, i32) {
    %c0_i32 = arith.constant 0 : i32
    %c0_i32_0 = arith.constant 0 : i32
    %c0_i32_1 = arith.constant 0 : i32
    return %c0_i32, %c0_i32_0 : i32, i32
  }
  func.func @transform_2(%arg0: i32) -> i32 {
    %c0_i32 = arith.constant 0 : i32
    %c0_i32_0 = arith.constant 0 : i32
    return %c0_i32 : i32
  }
  func.func @transform_3(%arg0: i32) -> (i32, i32) {
    %c0_i32 = arith.constant 0 : i32
    %c0_i32_0 = arith.constant 0 : i32
    return %c0_i32, %arg0 : i32, i32
  }
}

</mosaic_0001>

<llo_original>
// kernel: lenet2_classifier_forward.1
$region0: #{lenet2_classifier_forward.1}
  #allocation0 [shape = 'u32[]', space=smem, size = 0x4, offset = 0x4, fixed_abs, tag = 'smem constant byte address 0x4 - core index']
  #allocation1 [shape = 'u32[144,128]{1,0:T(1,128)}', space=vmem, size = 0x12000, scoped, tag = 'internal scratch']
  %s0 = inlined_call_operand.vmem [shape: f32[6,8], index: 0, kind: input, shape index: {}]
  %s1 = inlined_call_operand.vmem [shape: f32[2,6], index: 1, kind: input, shape index: {}]
  %s2 = inlined_call_operand.vmem [shape: f32[2], index: 2, kind: input, shape index: {}]
  %s3 = inlined_call_operand.hbm [shape: f32[2,8], index: 3, kind: output, shape index: {}]
  %s4 = sld [smem:[#allocation0]]
  $region30: #{lenet2_classifier_forward.1} parent=0
    _
  %s6 = ssub.s32 1, %s4
  %s7 = scalar_select 0, %s6, %s4
  $region1: #{lenet2_classifier_forward.1} parent=0
    #allocation2 [shape = 'u8[1024]{0}', space=smem, size = 0x400, scoped, tag = 'input window, operand 1, single buffered']
    #allocation3 [shape = 's32[1]{0}', space=sflag, size = 0x4, scoped, tag = 'scoped memory for lenet2_classifier_forward.1']
    #allocation4 [shape = 's32[1]{0}', space=sflag, size = 0x4, scoped, tag = 'scoped memory for lenet2_classifier_forward.1']
    #allocation5 [shape = 'u8[512]{0}', space=smem, size = 0x200, scoped, tag = 'input window, operand 2, single buffered']
    #allocation6 [shape = 's32[1]{0}', space=sflag, size = 0x4, scoped, tag = 'scoped memory for lenet2_classifier_forward.1']
    #allocation7 [shape = 'u8[1024]{0}', space=vmem, size = 0x400, scoped, tag = 'output window, operand 0, single buffered']
    %8 = vsyncpa [#allocation4], 0
    %9 = vsyncpa [#allocation6], 0
    %10 = vsyncpa [#allocation3], 0
    // Predicated region
    $region2: #{lenet2_classifier_forward.1} parent=1 // pred_check
      _
    $region3: #{lenet2_classifier_forward.1} parent=1 // pred_check_branch
      %12 = sbr.rel (0) target = $region5
    $region4: #{lenet2_classifier_forward.1} parent=1 // pred_region
      _
    $region5: #{lenet2_classifier_forward.1} parent=1 // pred_fallthru
      _
    // Predicated region
    $region6: #{lenet2_classifier_forward.1} parent=1 // pred_check
      _
    $region7: #{lenet2_classifier_forward.1} parent=1 // pred_check_branch
      %14 = sbr.rel (0) target = $region9
    $region8: #{lenet2_classifier_forward.1} parent=1 // pred_region
      %s16 = ssub.s32 32, 32
      %17 = vsyncadd [#allocation4], %s16
      %s19 = sshll.u32 %s1, 4
      %s20 = int_to_ptr.vmem [resolvable:$true] %s19
      %22 = dma.vmem_to_smem %s20, 32, [#allocation2], [#allocation4]
    $region9: #{lenet2_classifier_forward.1} parent=1 // pred_fallthru
      _
    // Predicated region
    $region10: #{lenet2_classifier_forward.1} parent=1 // pred_check
      _
    $region11: #{lenet2_classifier_forward.1} parent=1 // pred_check_branch
      %24 = sbr.rel (0) target = $region13
    $region12: #{lenet2_classifier_forward.1} parent=1 // pred_region
      %s26 = ssub.s32 16, 16
      %27 = vsyncadd [#allocation6], %s26
      %s29 = sshll.u32 %s2, 4
      %s30 = int_to_ptr.vmem [resolvable:$true] %s29
      %32 = dma.vmem_to_smem %s30, 16, [#allocation5], [#allocation6]
    $region13: #{lenet2_classifier_forward.1} parent=1 // pred_fallthru
      _
    // Predicated region
    $region14: #{lenet2_classifier_forward.1} parent=1 // pred_check
      _
    $region15: #{lenet2_classifier_forward.1} parent=1 // pred_check_branch
      %34 = sbr.rel (0) target = $region17
    $region16: #{lenet2_classifier_forward.1} parent=1 // pred_region
      %35 = dma.done [#allocation4], 32
    $region17: #{lenet2_classifier_forward.1} parent=1 // pred_fallthru
      _
    // Predicated region
    $region18: #{lenet2_classifier_forward.1} parent=1 // pred_check
      _
    $region19: #{lenet2_classifier_forward.1} parent=1 // pred_check_branch
      %37 = sbr.rel (0) target = $region21
    $region20: #{lenet2_classifier_forward.1} parent=1 // pred_region
      %38 = dma.done [#allocation6], 16
    $region21: #{lenet2_classifier_forward.1} parent=1 // pred_fallthru
      _
    %39 = sfence
    %s40 = sld [smem:[#allocation5]]
    %v41 = vstv %s40
    %s42 = sld [smem:[#allocation5 + $0x1]]
    %v43 = vstv %s42
    %v44 = vld [vmem:[%s0] sm:$0x1]
    %v45 = vmax.f32 %v44, 0.0
    %s46 = sld [smem:[#allocation2]]
    %v47 = vstv %s46
    %v48 = vmul.f32 %v47, %v45
    %v49 = vadd.f32 %v41, %v48
    %s50 = sld [smem:[#allocation2 + $0x80]]
    %v51 = vstv %s50
    %v52 = vmul.f32 %v51, %v45
    %v53 = vadd.f32 %v43, %v52
    %v54 = vld [vmem:[%s0 + $0x1] sm:$0x1]
    %v55 = vmax.f32 %v54, 0.0
    %s56 = sld [smem:[#allocation2 + $0x1]]
    %v57 = vstv %s56
    %v58 = vmul.f32 %v57, %v55
    %v59 = vadd.f32 %v49, %v58
    %s60 = sld [smem:[#allocation2 + $0x81]]
    %v61 = vstv %s60
    %v62 = vmul.f32 %v61, %v55
    %v63 = vadd.f32 %v53, %v62
    %v64 = vld [vmem:[%s0 + $0x2] sm:$0x1]
    %v65 = vmax.f32 %v64, 0.0
    %s66 = sld [smem:[#allocation2 + $0x2]]
    %v67 = vstv %s66
    %v68 = vmul.f32 %v67, %v65
    %v69 = vadd.f32 %v59, %v68
    %s70 = sld [smem:[#allocation2 + $0x82]]
    %v71 = vstv %s70
    %v72 = vmul.f32 %v71, %v65
    %v73 = vadd.f32 %v63, %v72
    %v74 = vld [vmem:[%s0 + $0x3] sm:$0x1]
    %v75 = vmax.f32 %v74, 0.0
    %s76 = sld [smem:[#allocation2 + $0x3]]
    %v77 = vstv %s76
    %v78 = vmul.f32 %v77, %v75
    %v79 = vadd.f32 %v69, %v78
    %s80 = sld [smem:[#allocation2 + $0x83]]
    %v81 = vstv %s80
    %v82 = vmul.f32 %v81, %v75
    %v83 = vadd.f32 %v73, %v82
    %v84 = vld [vmem:[%s0 + $0x4] sm:$0x1]
    %v85 = vmax.f32 %v84, 0.0
    %s86 = sld [smem:[#allocation2 + $0x4]]
    %v87 = vstv %s86
    %v88 = vmul.f32 %v87, %v85
    %v89 = vadd.f32 %v79, %v88
    %s90 = sld [smem:[#allocation2 + $0x84]]
    %v91 = vstv %s90
    %v92 = vmul.f32 %v91, %v85
    %v93 = vadd.f32 %v83, %v92
    %v94 = vld [vmem:[%s0 + $0x5] sm:$0x1]
    %v95 = vmax.f32 %v94, 0.0
    %s96 = sld [smem:[#allocation2 + $0x5]]
    %v97 = vstv %s96
    %v98 = vmul.f32 %v97, %v95
    %v99 = vadd.f32 %v89, %v98
    %s100 = sld [smem:[#allocation2 + $0x85]]
    %v101 = vstv %s100
    %v102 = vmul.f32 %v101, %v95
    %v103 = vadd.f32 %v93, %v102
    %vm104 = vcmask 57344
    %105 = vst.msk [vmem:[#allocation7] sm:$0x1] %vm104, %v99
    %106 = vst.msk [vmem:[#allocation7 + $0x1] sm:$0x1] %vm104, %v103
    // Predicated region
    $region22: #{lenet2_classifier_forward.1} parent=1 // pred_check
      _
    $region23: #{lenet2_classifier_forward.1} parent=1 // pred_check_branch
      %108 = sbr.rel (0) target = $region25
    $region24: #{lenet2_classifier_forward.1} parent=1 // pred_region
      %s110 = ssub.s32 32, 32
      %111 = vsyncadd [#allocation3], %s110
      %s113 = sshll.u32 [#allocation7], 4
      %s114 = int_to_ptr.vmem [resolvable:$true] %s113
      %116 = dma.vmem_to_hbm [thread:$0]  %s114, 32, %s3, [#allocation3]
    $region25: #{lenet2_classifier_forward.1} parent=1 // pred_fallthru
      _
    // Predicated region
    $region26: #{lenet2_classifier_forward.1} parent=1 // pred_check
      _
    $region27: #{lenet2_classifier_forward.1} parent=1 // pred_check_branch
      %118 = sbr.rel (0) target = $region29
    $region28: #{lenet2_classifier_forward.1} parent=1 // pred_region
      %119 = dma.done [#allocation3], 32
    $region29: #{lenet2_classifier_forward.1} parent=1 // pred_fallthru
      _
    %120 = vsyncpa [#allocation3], 1
    %121 = vsyncpa [#allocation4], 1
    %122 = vsyncpa [#allocation6], 1

</llo_original>
